<compile_context>
chip_gen: v5e
topology: v5e:2x2
jax: 0.10.0
libtpu: 0.0.40
codegen_flags: <defaults>
</compile_context>

<pallas_src>
import jax
import jax.numpy as jnp
from jax.experimental import pallas as pl
from jax.experimental.pallas import tpu as pltpu

_MIB = 1024 * 1024


def _logreg_kernel(x_ref, w_ref, b_ref, o_ref):
    # x_ref: (TB, k*D) VMEM tile of the packed, flattened input (lane dense)
    # w_ref: (k*D, k)  VMEM block-diagonal weight, resident across the grid
    # b_ref: (1,)      SMEM scalar bias
    # o_ref: (TB, k)   VMEM output block: k per-sample logits per packed row
    logits = jnp.dot(x_ref[...], w_ref[...],
                     preferred_element_type=jnp.float32)   # MXU, f32 accumulate
    z = logits + b_ref[0]
    # sigmoid = 1 / (1 + exp(-z)): exp + reciprocal both issue on the EUP.
    o_ref[...] = pl.reciprocal(1.0 + jnp.exp(-z), approx=False).astype(o_ref.dtype)


def _round_up(v, m):
    return ((v + m - 1) // m) * m


def _round_down(v, m):
    return (v // m) * m


def _vmem_capacity_bytes():
    """Per-TensorCore VMEM capacity (128 MiB v5e/v6e, 64 MiB v7x)."""
    try:
        cap = getattr(pltpu.get_tpu_info(), "vmem_capacity_bytes", None)
        if cap:
            return int(cap)
    except Exception:
        pass
    return 64 * _MIB            # conservative (v7x) default


def _choose_pack(batch, feat):
    """Samples packed per row: k*feat lane-dense, k | batch, tiny block-diag W."""
    if feat > 128 or 128 % feat != 0:
        return 1                # odd feature count: fall back to lane padding
    k = 128 // feat
    while k > 1 and batch % k != 0:
        k //= 2
    # Grow k (keeping k | batch and k*feat a multiple of 128) so the matmul
    # output / sigmoid epilogue stays lane-dense; cap the block-diagonal
    # weight's VMEM footprint (k*feat rows x 128 padded lanes x 4B) at ~2 MiB.
    while k < 128 and batch % (2 * k) == 0 and (2 * k * feat) * 512 <= 2 * _MIB:
        k *= 2
    return k


def _choose_rows(bp_rows, row_elems, out_elems, itemsize, vmem_limit):
    """Rows per streamed x tile (multiple of 8, <= bp_rows)."""
    hbm_row_bytes = row_elems * itemsize
    vmem_row_bytes = _round_up(row_elems, 128) * itemsize      # x row in VMEM
    vmem_out_bytes = _round_up(out_elems, 128) * 4             # f32 out row in VMEM
    # ~8 MiB of HBM bytes per tile keeps the ~0.35us/step overhead under ~5%.
    rows_target = (8 * _MIB) // hbm_row_bytes
    # Double-buffered x + out tiles (plus headroom for the resident weight and
    # compiler scratch) must fit the scoped-VMEM limit.
    budget = max(_MIB, vmem_limit - 6 * _MIB)
    rows_vmem = budget // (2 * (vmem_row_bytes + vmem_out_bytes))
    rows = max(8, min(rows_target, rows_vmem))
    # Keep >=8 grid steps on large batches (v7x megacore split + pipelining),
    # but never shrink below ~2 MiB of HBM bytes per tile.
    rows_floor = max(8, (2 * _MIB) // hbm_row_bytes)
    rows_split = max(rows_floor, _round_down((bp_rows + 7) // 8, 8))
    rows = min(rows, rows_split)
    rows = max(8, _round_down(rows, 8))
    rows = min(rows, max(8, _round_down(bp_rows, 8)))
    return rows


def logreg_forward(x, weight, bias, num_units, num_fr):
    """Pallas equivalent of LogReg.forward.

    x      : (B, num_units, num_fr) (f32 or bf16), or already (B, D)
    weight : (1, D) or (D,)  -- torch.nn.Linear(D, 1).weight layout
    bias   : (1,) or scalar  -- torch.nn.Linear(D, 1).bias
    returns: (B, 1) float32
    """
    D = num_units * num_fr
    x2 = x.reshape(-1, D)                       # keep caller dtype (bf16 ok)
    B = x2.shape[0]
    itemsize = x2.dtype.itemsize

    # Pack k samples per row (free reshape) and build the matching
    # block-diagonal weight so one MXU dot yields k per-sample sums per row.
    k = _choose_pack(B, D)
    w = weight.reshape(-1).astype(x2.dtype)
    if k == 1:
        w_blk = w.reshape(D, 1)
    else:
        w_blk = (jnp.eye(k, dtype=w.dtype)[:, None, :]
                 * w[None, :, None]).reshape(k * D, k)
    b = bias.reshape(1).astype(jnp.float32)

    xp = x2.reshape(B // k, k * D)
    Bp = xp.shape[0]
    if Bp < 8:                                  # tiny batch: pad to one 8-row block
        xp = jnp.pad(xp, ((0, 8 - Bp), (0, 0)))
        Bp = 8

    vmem_limit = int(min(_vmem_capacity_bytes() * 3 // 4, 64 * _MIB))
    rows = _choose_rows(Bp, k * D, k, itemsize, vmem_limit)
    grid = (pl.cdiv(Bp, rows),)

    out = pl.pallas_call(
        _logreg_kernel,
        out_shape=jax.ShapeDtypeStruct((Bp, k), jnp.float32),
        grid_spec=pltpu.PrefetchScalarGridSpec(
            num_scalar_prefetch=0,
            grid=grid,
            in_specs=[
                pl.BlockSpec((rows, k * D), lambda i: (i, 0)),       # streamed x
                pl.BlockSpec((k * D, k), lambda i: (0, 0)),          # resident W
                pl.BlockSpec(memory_space=pltpu.MemorySpace.SMEM),   # scalar bias
            ],
            out_specs=pl.BlockSpec((rows, k), lambda i: (i, 0)),
        ),
        compiler_params=pltpu.CompilerParams(
            dimension_semantics=("parallel",),
            vmem_limit_bytes=vmem_limit,
        ),
    )(xp, w_blk, b)

    # (Bp, k) row-major == original sample order; drop batch padding if any.
    return out.reshape(-1)[:B].reshape(B, 1)


if __name__ == "__main__":
    num_units, num_fr = 4, 16
    D = num_units * num_fr

    key = jax.random.PRNGKey(0)
    kx, kw, kb, kx2, kx3 = jax.random.split(key, 5)

    # PyTorch-style init: uniform(-1/sqrt(D), 1/sqrt(D)); torch Linear layout.
    bound = 1.0 / float(jnp.sqrt(jnp.float32(D)))
    weight = jax.random.uniform(kw, (1, D), jnp.float32, -bound, bound)
    bias = jax.random.uniform(kb, (1,), jnp.float32, -bound, bound)

    def check(xin, got, atol=1e-4):
        xf = xin.reshape(-1, D).astype(jnp.float32)
        wf = weight.reshape(-1).astype(jnp.float32)
        # Exact-f32 reference and a bf16-input-precision reference: the MXU may
        # evaluate f32 matmuls at either precision depending on generation and
        # defaults; the kernel must tightly match one of them.
        ref_hi = jax.nn.sigmoid(jnp.sum(xf * wf, axis=-1, keepdims=True) + bias)
        xlo = xf.astype(jnp.bfloat16).astype(jnp.float32)
        wlo = wf.astype(jnp.bfloat16).astype(jnp.float32)
        ref_lo = jax.nn.sigmoid(jnp.sum(xlo * wlo, axis=-1, keepdims=True) + bias)
        err_hi = float(jnp.max(jnp.abs(got - ref_hi)))
        err_lo = float(jnp.max(jnp.abs(got - ref_lo)))
        assert min(err_hi, err_lo) <= atol, (err_hi, err_lo)

    # Small batch: pack factor 2, single padded 8-row tile.
    x = jax.random.normal(kx, (2, num_units, num_fr), jnp.float32)
    out = logreg_forward(x, weight, bias, num_units, num_fr)
    jax.block_until_ready(out)
    assert out.shape == (2, 1)
    check(x, out)

    # Larger batch: pack factor 8, multi-tile pipelined grid, partial last tile.
    xb_in = jax.random.normal(kx2, (9000, num_units, num_fr), jnp.float32)
    out_b = logreg_forward(xb_in, weight, bias, num_units, num_fr)
    jax.block_until_ready(out_b)
    assert out_b.shape == (9000, 1)
    check(xb_in, out_b)

    # Odd batch exercises the unpacked (k=1) fallback + batch-padding path.
    xo = jax.random.normal(kx3, (7, num_units, num_fr), jnp.float32)
    out_o = logreg_forward(xo, weight, bias, num_units, num_fr)
    jax.block_until_ready(out_o)
    assert out_o.shape == (7, 1)
    check(xo, out_o)

    print("KERNEL_OK")
</pallas_src>

<mosaic_0001>
module attributes {stable_mosaic.version = 11 : i64} {
  func.func @_logreg_kernel(%arg0: i32, %arg1: memref<8x128xf32, #tpu.memory_space<vmem>>, %arg2: memref<128x2xf32, #tpu.memory_space<vmem>>, %arg3: memref<1xf32, #tpu.memory_space<smem>>, %arg4: memref<8x2xf32, #tpu.memory_space<vmem>>) attributes {dimension_semantics = [#tpu.dimension_semantics<parallel>], iteration_bounds = array<i64: 1>, scalar_prefetch = 0 : i64, scratch_operands = 0 : i64, tpu.core_type = #tpu.core_type<tc>, window_params = [{transform_indices = @transform_0, window_bounds = array<i64: 8, 128>}, {pipeline_mode = #tpu.pipeline_mode<synchronous>, transform_indices = @transform_1, window_bounds = array<i64: 128, 2>}, {transform_indices = @transform_2, window_bounds = array<i64: 1>}, {transform_indices = @transform_3, window_bounds = array<i64: 8, 2>}]} {
    %c0 = arith.constant 0 : index
    %c0_0 = arith.constant 0 : index
    %0 = vector.load %arg1[%c0, %c0_0] : memref<8x128xf32, #tpu.memory_space<vmem>>, vector<8x128xf32>
    %c0_1 = arith.constant 0 : index
    %c0_2 = arith.constant 0 : index
    %1 = vector.load %arg2[%c0_1, %c0_2] : memref<128x2xf32, #tpu.memory_space<vmem>>, vector<128x2xf32>
    %cst = arith.constant dense<0.000000e+00> : vector<8x2xf32>
    %2 = tpu.matmul %0, %1, %cst {dimension_numbers = #tpu.dot_dimension_numbers<[1], [0], [0], [1], [0, 0, 1, 1], [], []>} : vector<8x128xf32>, vector<128x2xf32>, vector<8x2xf32> -> vector<8x2xf32>
    %c0_3 = arith.constant 0 : index
    %3 = memref.load %arg3[%c0_3] : memref<1xf32, #tpu.memory_space<smem>>
    %4 = vector.broadcast %3 : f32 to vector<8x2xf32>
    %5 = arith.addf %2, %4 : vector<8x2xf32>
    %cst_4 = arith.constant 0.000000e+00 : f32
    %6 = vector.broadcast %cst_4 : f32 to vector<8x2xf32>
    %7 = arith.subf %6, %5 : vector<8x2xf32>
    %8 = math.exp %7 : vector<8x2xf32>
    %cst_5 = arith.constant 1.000000e+00 : f32
    %9 = vector.broadcast %cst_5 : f32 to vector<8x2xf32>
    %10 = arith.addf %9, %8 : vector<8x2xf32>
    %11 = tpu.reciprocal %10 : vector<8x2xf32> -> vector<8x2xf32>
    %c0_6 = arith.constant 0 : index
    %c0_7 = arith.constant 0 : index
    %12 = vector.load %arg4[%c0_6, %c0_7] : memref<8x2xf32, #tpu.memory_space<vmem>>, vector<8x2xf32>
    tpu.vector_store %arg4[%c0_6, %c0_7], %11 {strides = array<i32>} : memref<8x2xf32, #tpu.memory_space<vmem>>, vector<8x2xf32>,
    return
  }
  func.func @transform_0(%arg0: i32) -> (i32, i32) {
    %c0_i32 = arith.constant 0 : i32
    %c0_i32_0 = arith.constant 0 : i32
    return %arg0, %c0_i32 : i32, i32
  }
  func.func @transform_1(%arg0: i32) -> (i32, i32) {
    %c0_i32 = arith.constant 0 : i32
    %c0_i32_0 = arith.constant 0 : i32
    %c0_i32_1 = arith.constant 0 : i32
    return %c0_i32, %c0_i32_0 : i32, i32
  }
  func.func @transform_2(%arg0: i32) -> i32 {
    %c0_i32 = arith.constant 0 : i32
    %c0_i32_0 = arith.constant 0 : i32
    return %c0_i32 : i32
  }
  func.func @transform_3(%arg0: i32) -> (i32, i32) {
    %c0_i32 = arith.constant 0 : i32
    %c0_i32_0 = arith.constant 0 : i32
    return %arg0, %c0_i32 : i32, i32
  }
}

</mosaic_0001>

<llo_original>
// kernel: tpu_custom_call.1
$region0: #{tpu_custom_call.1}
  #allocation0 [shape = 'u32[]', space=smem, size = 0x4, offset = 0x4, fixed_abs, tag = 'smem constant byte address 0x4 - core index']
  #allocation1 [shape = 'u32[72,128]{1,0:T(1,128)}', space=vmem, size = 0x9000, scoped, tag = 'internal scratch']
  #allocation2 [shape = 'f32[1]{0:T(128)S(6)}', space=smem, size = 0x200, scoped, tag = 'scoped memory for tpu_custom_call.1']
  %s0 = inlined_call_operand.vmem [shape: f32[8,128], index: 0, kind: input, shape index: {}]
  %s1 = inlined_call_operand.vmem [shape: f32[128,2], index: 1, kind: input, shape index: {}]
  %s2 = inlined_call_operand.<no memory space> [shape: f32[1], index: 2, kind: input, shape index: {}]
  %s3 = inlined_call_operand.vmem [shape: f32[8,2], index: 3, kind: output, shape index: {}]
  %s4 = sld [smem:[#allocation0]]
  $region22: #{tpu_custom_call.1} parent=0
    _
  %s6 = ssub.s32 1, %s4
  %s7 = scalar_select 0, %s6, %s4
  %8 = sst [smem:[#allocation2]] %s2
  // Predicated region
  $region2: #{tpu_custom_call.1} parent=0 // pred_check
    _
  $region3: #{tpu_custom_call.1} parent=0 // pred_check_branch
    %10 = sbr.rel (0) target = $region5
  $region4: #{tpu_custom_call.1} parent=0 // pred_region
    _
  $region5: #{tpu_custom_call.1} parent=0 // pred_fallthru
    _
  // Predicated region
  $region6: #{tpu_custom_call.1} parent=0 // pred_check
    _
  $region7: #{tpu_custom_call.1} parent=0 // pred_check_branch
    %12 = sbr.rel (0) target = $region9
  $region8: #{tpu_custom_call.1} parent=0 // pred_region
    _
  $region9: #{tpu_custom_call.1} parent=0 // pred_fallthru
    _
  // Predicated region
  $region10: #{tpu_custom_call.1} parent=0 // pred_check
    _
  $region11: #{tpu_custom_call.1} parent=0 // pred_check_branch
    %14 = sbr.rel (0) target = $region13
  $region12: #{tpu_custom_call.1} parent=0 // pred_region
    _
  $region13: #{tpu_custom_call.1} parent=0 // pred_fallthru
    _
  %v15 = vld [vmem:[%s0] sm:$0xff]
  %v16 = vld [vmem:[%s1] sm:$0xff]
  %v17 = vld [vmem:[%s1 + $0x8] sm:$0xff]
  %v18 = vld [vmem:[%s1 + $0x10] sm:$0xff]
  %v19 = vld [vmem:[%s1 + $0x18] sm:$0xff]
  %v20 = vld [vmem:[%s1 + $0x20] sm:$0xff]
  %v21 = vld [vmem:[%s1 + $0x28] sm:$0xff]
  %v22 = vld [vmem:[%s1 + $0x30] sm:$0xff]
  %v23 = vld [vmem:[%s1 + $0x38] sm:$0xff]
  %v24 = vld [vmem:[%s1 + $0x40] sm:$0xff]
  %v25 = vld [vmem:[%s1 + $0x48] sm:$0xff]
  %v26 = vld [vmem:[%s1 + $0x50] sm:$0xff]
  %v27 = vld [vmem:[%s1 + $0x58] sm:$0xff]
  %v28 = vld [vmem:[%s1 + $0x60] sm:$0xff]
  %v29 = vld [vmem:[%s1 + $0x68] sm:$0xff]
  %v30 = vld [vmem:[%s1 + $0x70] sm:$0xff]
  %v31 = vld [vmem:[%s1 + $0x78] sm:$0xff]
  %s32 = sld [smem:[#allocation2]]
  %v33 = vstv %s32
  %34 = vmatpush.msra.mxu0 %v31
  %35 = vmatpush.msra.mxu0 %v30
  %36 = vmatpush.msra.mxu0 %v29
  %37 = vmatpush.msra.mxu0 %v28
  %38 = vmatpush.msra.mxu0 %v27
  %39 = vmatpush.msra.mxu0 %v26
  %40 = vmatpush.msra.mxu0 %v25
  %41 = vmatpush.msra.mxu0 %v24
  %42 = vmatpush.msra.mxu0 %v23
  %43 = vmatpush.msra.mxu0 %v22
  %44 = vmatpush.msra.mxu0 %v21
  %45 = vmatpush.msra.mxu0 %v20
  %46 = vmatpush.msra.mxu0 %v19
  %47 = vmatpush.msra.mxu0 %v18
  %48 = vmatpush.msra.mxu0 %v17
  %49 = vmatpush.msra.mxu0 %v16
  %50 = vmatmul.f32.gmra.mxu0 %v15
  %v51 = vpop.f32.mrf.mxu0
  %v52 = vadd.f32 %v33, %v51
  %53 = vdwg.mxu0
  %v54 = vsub.f32 0.0, %v52
  %v55 = vmul.f32 %v54, 1.442695
  %v56 = vpow.pop %v55
  %v57 = vadd.f32 %v56, 1.0
  %v58 = vrcp.pop %v57
  %v59 = vmul.f32 %v57, %v58
  %v60 = vsub.f32 1.0, %v59
  %v61 = vmul.f32 %v58, %v60
  %v62 = vadd.f32 %v58, %v61
  %vm63 = vweird.f32 %v57
  %vm64 = vweird.f32 %v58
  %vm65 = vmor %vm63, %vm64
  %v66 = vsel %vm65, %v58, %v62
  %v67 = vand.u32 2147483647, %v57
  %vm68 = vcmp.eq.f32.partialorder %v67, 8.507059e+37
  %v69 = vand.u32 %v57, 2147483648
  %v70 = vor.u32 1.1754944e-38, %v69
  %v71 = vsel %vm68, %v70, %v66
  %vm72 = vcmask 15360
  %73 = vst.msk [vmem:[%s3] sm:$0xff] %vm72, %v71
  // Predicated region
  $region14: #{tpu_custom_call.1} parent=0 // pred_check
    _
  $region15: #{tpu_custom_call.1} parent=0 // pred_check_branch
    %75 = sbr.rel (0) target = $region17
  $region16: #{tpu_custom_call.1} parent=0 // pred_region
    _
  $region17: #{tpu_custom_call.1} parent=0 // pred_fallthru
    _
  // Predicated region
  $region18: #{tpu_custom_call.1} parent=0 // pred_check
    _
  $region19: #{tpu_custom_call.1} parent=0 // pred_check_branch
    %77 = sbr.rel (0) target = $region21
  $region20: #{tpu_custom_call.1} parent=0 // pred_region
    _
  $region21: #{tpu_custom_call.1} parent=0 // pred_fallthru
    _

</llo_original>
